<compile_context>
chip_gen: v6e
topology: v6e:2x2x1
jax: 0.10.0
libtpu: 0.0.40
codegen_flags: <defaults>
</compile_context>

<pallas_src>
import functools

import numpy as np
import jax
import jax.numpy as jnp
from jax.experimental import pallas as pl
from jax.experimental.pallas import tpu as pltpu

_EPS = 1e-5  # nn.GroupNorm default eps


# ----------------------------- fused kernel ----------------------------------
def _shuffle_attention_kernel(x_ref, p_ref, o_ref):
    """Fused ShuffleAttention for one image.

    x_ref : (1, L, C) input, channel-last, channels pre-permuted so that the
            kernel's output channel order is already the post-channel_shuffle
            order.
    p_ref : (8, C) per-channel parameter vectors
            rows = [is_spatial, cweight, cbias, sweight, sbias, gn_gamma,
                    gn_beta, <pad>]
    o_ref : (1, L, C) output.
    """
    x = x_ref[0]                                   # (L, C): C on lanes
    L = x.shape[0]
    p = p_ref[...]
    is_sp = p[0:1, :]
    cw, cb = p[1:2, :], p[2:3, :]
    sw, sb = p[3:4, :], p[4:5, :]
    gw, gb = p[5:6, :], p[6:7, :]

    inv_l = 1.0 / L
    mean = jnp.sum(x, axis=0, keepdims=True) * inv_l           # avg-pool / GN mean
    d = x - mean
    var = jnp.sum(d * d, axis=0, keepdims=True) * inv_l        # GN biased variance
    rstd = jax.lax.rsqrt(var + _EPS)

    # Gate input is affine in x with per-channel coefficients:
    #   channel branch (is_sp=0): cw*mean + cb                     (const over L)
    #   spatial branch (is_sp=1): sw*(gw*(x-mean)*rstd + gb) + sb  (per element)
    a_coef = is_sp * (sw * gw * rstd)                                       # (1, C)
    b_coef = (is_sp * (sb + sw * (gb - gw * rstd * mean))
              + (1.0 - is_sp) * (cw * mean + cb))                           # (1, C)
    gate = x * a_coef + b_coef
    o_ref[0] = x * (1.0 / (1.0 + jnp.exp(-gate)))               # x * sigmoid(gate)


# ----------------------- static channel bookkeeping --------------------------
def _build_channel_params(params, c, g):
    """Fold group/branch structure + channel_shuffle into per-channel vectors."""
    cg2 = c // (2 * g)               # channels per half-group
    cg = 2 * cg2                     # channels per group (after view b*G)

    # channel_shuffle(groups=2): final channel j <- pre-shuffle channel perm[j]
    j = np.arange(c)
    perm = (j % 2) * (c // 2) + (j // 2)

    # pre-shuffle channel == input channel; branch decided by within-group idx
    r = perm % cg
    is_sp = (r >= cg2).astype(np.float32)
    idx_c = np.where(r < cg2, r, 0)          # index into cweight / cbias
    idx_s = np.where(r >= cg2, r - cg2, 0)   # index into sweight / sbias / gn

    pvec = jnp.stack([
        jnp.asarray(is_sp, jnp.float32),
        params['cweight'][idx_c],
        params['cbias'][idx_c],
        params['sweight'][idx_s],
        params['sbias'][idx_s],
        params['gn_w'][idx_s],
        params['gn_b'][idx_s],
        jnp.zeros((c,), jnp.float32),        # pad to 8 sublanes
    ], axis=0)
    return perm, pvec


# ------------------------------- wrapper --------------------------------------
def shuffle_attention(x_nchw, params, G=8):
    b, c, h, w = x_nchw.shape
    L = h * w
    perm, pvec = _build_channel_params(params, c, G)

    # NCHW -> (B, L, C) channel-last; fold the channel-shuffle permutation into
    # this single input gather so the kernel writes final channel order.
    x_blc = jnp.transpose(x_nchw, (0, 2, 3, 1)).reshape(b, L, c)[:, :, perm]

    out = pl.pallas_call(
        _shuffle_attention_kernel,
        grid=(b,),
        in_specs=[
            pl.BlockSpec((1, L, c), lambda i: (i, 0, 0)),
            pl.BlockSpec((8, c), lambda i: (0, 0)),
        ],
        out_specs=pl.BlockSpec((1, L, c), lambda i: (i, 0, 0)),
        out_shape=jax.ShapeDtypeStruct((b, L, c), jnp.float32),
        compiler_params=pltpu.CompilerParams(
            dimension_semantics=("parallel",)),
    )(x_blc, pvec)

    return jnp.transpose(out.reshape(b, h, w, c), (0, 3, 1, 2))


# --------------------------- pure-JAX reference --------------------------------
def shuffle_attention_ref(x, params, G=8):
    b, c, h, w = x.shape
    cg2 = c // (2 * G)
    xg = x.reshape(b * G, c // G, h, w)
    x0, x1 = xg[:, :cg2], xg[:, cg2:]

    # channel attention branch
    xc = jnp.mean(x0, axis=(2, 3), keepdims=True)
    xc = params['cweight'][None, :, None, None] * xc + params['cbias'][None, :, None, None]
    xc = x0 * (1.0 / (1.0 + jnp.exp(-xc)))

    # spatial attention branch (GroupNorm with groups == channels)
    mu = jnp.mean(x1, axis=(2, 3), keepdims=True)
    var = jnp.mean((x1 - mu) ** 2, axis=(2, 3), keepdims=True)
    xn = (x1 - mu) / jnp.sqrt(var + _EPS)
    xn = xn * params['gn_w'][None, :, None, None] + params['gn_b'][None, :, None, None]
    xs = params['sweight'][None, :, None, None] * xn + params['sbias'][None, :, None, None]
    xs = x1 * (1.0 / (1.0 + jnp.exp(-xs)))

    out = jnp.concatenate([xc, xs], axis=1).reshape(b, c, h, w)
    # channel_shuffle(groups=2)
    out = out.reshape(b, 2, c // 2, h, w)
    out = jnp.transpose(out, (0, 2, 1, 3, 4)).reshape(b, c, h, w)
    return out


# --------------------------------- main ----------------------------------------
if __name__ == "__main__":
    B, C, H, W = 2, 64, 16, 16
    G = 8
    cg2 = C // (2 * G)

    key = jax.random.PRNGKey(0)
    kx, k1, k2, k3, k4, k5, k6 = jax.random.split(key, 7)
    # module defaults are zeros/ones; use small random perturbations so the
    # kernel's math is actually exercised.
    params = {
        'cweight': 0.2 * jax.random.normal(k1, (cg2,), jnp.float32),
        'cbias':   jnp.ones((cg2,), jnp.float32) + 0.1 * jax.random.normal(k2, (cg2,), jnp.float32),
        'sweight': 0.2 * jax.random.normal(k3, (cg2,), jnp.float32),
        'sbias':   jnp.ones((cg2,), jnp.float32) + 0.1 * jax.random.normal(k4, (cg2,), jnp.float32),
        'gn_w':    jnp.ones((cg2,), jnp.float32) + 0.1 * jax.random.normal(k5, (cg2,), jnp.float32),
        'gn_b':    0.1 * jax.random.normal(k6, (cg2,), jnp.float32),
    }
    x = jax.random.normal(kx, (B, C, H, W), jnp.float32)

    fwd = jax.jit(functools.partial(shuffle_attention, G=G))
    out = jax.block_until_ready(fwd(x, params))

    assert out.shape == (B, C, H, W)
    assert bool(jnp.all(jnp.isfinite(out)))

    ref = shuffle_attention_ref(x, params, G=G)
    max_err = float(jnp.max(jnp.abs(out - ref)))
    assert max_err < 1e-4, f"mismatch vs reference: {max_err}"

    print("KERNEL_OK")
</pallas_src>

<mosaic_0001>
module attributes {stable_mosaic.version = 11 : i64} {
  func.func @_shuffle_attention_kernel(%arg0: i32, %arg1: memref<1x256x64xf32, #tpu.memory_space<vmem>>, %arg2: memref<8x64xf32, #tpu.memory_space<vmem>>, %arg3: memref<1x256x64xf32, #tpu.memory_space<vmem>>) attributes {dimension_semantics = [#tpu.dimension_semantics<parallel>], iteration_bounds = array<i64: 2>, scalar_prefetch = 0 : i64, scratch_operands = 0 : i64, tpu.core_type = #tpu.core_type<tc>, window_params = [{transform_indices = @transform_0, window_bounds = array<i64: 1, 256, 64>}, {pipeline_mode = #tpu.pipeline_mode<synchronous>, transform_indices = @transform_1, window_bounds = array<i64: 8, 64>}, {transform_indices = @transform_2, window_bounds = array<i64: 1, 256, 64>}]} {
    %c0 = arith.constant 0 : index
    %c0_0 = arith.constant 0 : index
    %c0_1 = arith.constant 0 : index
    %0 = vector.load %arg1[%c0, %c0_0, %c0_1] : memref<1x256x64xf32, #tpu.memory_space<vmem>>, vector<1x256x64xf32>
    %1 = vector.shape_cast %0 : vector<1x256x64xf32> to vector<256x64xf32>
    %c0_2 = arith.constant 0 : index
    %c0_3 = arith.constant 0 : index
    %2 = vector.load %arg2[%c0_2, %c0_3] : memref<8x64xf32, #tpu.memory_space<vmem>>, vector<8x64xf32>
    %3 = vector.extract_strided_slice %2 {offsets = [0, 0], sizes = [1, 64], strides = [1, 1]} : vector<8x64xf32> to vector<1x64xf32>
    %4 = vector.extract_strided_slice %2 {offsets = [1, 0], sizes = [1, 64], strides = [1, 1]} : vector<8x64xf32> to vector<1x64xf32>
    %5 = vector.extract_strided_slice %2 {offsets = [2, 0], sizes = [1, 64], strides = [1, 1]} : vector<8x64xf32> to vector<1x64xf32>
    %6 = vector.extract_strided_slice %2 {offsets = [3, 0], sizes = [1, 64], strides = [1, 1]} : vector<8x64xf32> to vector<1x64xf32>
    %7 = vector.extract_strided_slice %2 {offsets = [4, 0], sizes = [1, 64], strides = [1, 1]} : vector<8x64xf32> to vector<1x64xf32>
    %8 = vector.extract_strided_slice %2 {offsets = [5, 0], sizes = [1, 64], strides = [1, 1]} : vector<8x64xf32> to vector<1x64xf32>
    %9 = vector.extract_strided_slice %2 {offsets = [6, 0], sizes = [1, 64], strides = [1, 1]} : vector<8x64xf32> to vector<1x64xf32>
    %cst = arith.constant dense<0.000000e+00> : vector<64xf32>
    %10 = vector.multi_reduction <add>, %1, %cst [0] : vector<256x64xf32> to vector<64xf32>
    %11 = vector.shape_cast %10 : vector<64xf32> to vector<1x64xf32>
    %cst_4 = arith.constant 3.906250e-03 : f32
    %12 = vector.broadcast %cst_4 : f32 to vector<1x64xf32>
    %13 = arith.mulf %11, %12 : vector<1x64xf32>
    %14 = vector.broadcast %13 : vector<1x64xf32> to vector<256x64xf32>
    %15 = arith.subf %1, %14 : vector<256x64xf32>
    %16 = arith.mulf %15, %15 : vector<256x64xf32>
    %cst_5 = arith.constant dense<0.000000e+00> : vector<64xf32>
    %17 = vector.multi_reduction <add>, %16, %cst_5 [0] : vector<256x64xf32> to vector<64xf32>
    %18 = vector.shape_cast %17 : vector<64xf32> to vector<1x64xf32>
    %cst_6 = arith.constant 3.906250e-03 : f32
    %19 = vector.broadcast %cst_6 : f32 to vector<1x64xf32>
    %20 = arith.mulf %18, %19 : vector<1x64xf32>
    %cst_7 = arith.constant 9.99999974E-6 : f32
    %21 = vector.broadcast %cst_7 : f32 to vector<1x64xf32>
    %22 = arith.addf %20, %21 : vector<1x64xf32>
    %23 = math.rsqrt %22 : vector<1x64xf32>
    %24 = arith.mulf %6, %8 : vector<1x64xf32>
    %25 = arith.mulf %24, %23 : vector<1x64xf32>
    %26 = arith.mulf %3, %25 : vector<1x64xf32>
    %27 = arith.mulf %8, %23 : vector<1x64xf32>
    %28 = arith.mulf %27, %13 : vector<1x64xf32>
    %29 = arith.subf %9, %28 : vector<1x64xf32>
    %30 = arith.mulf %6, %29 : vector<1x64xf32>
    %31 = arith.addf %7, %30 : vector<1x64xf32>
    %32 = arith.mulf %3, %31 : vector<1x64xf32>
    %cst_8 = arith.constant 1.000000e+00 : f32
    %33 = vector.broadcast %cst_8 : f32 to vector<1x64xf32>
    %34 = arith.subf %33, %3 : vector<1x64xf32>
    %35 = arith.mulf %4, %13 : vector<1x64xf32>
    %36 = arith.addf %35, %5 : vector<1x64xf32>
    %37 = arith.mulf %34, %36 : vector<1x64xf32>
    %38 = arith.addf %32, %37 : vector<1x64xf32>
    %39 = vector.broadcast %26 : vector<1x64xf32> to vector<256x64xf32>
    %40 = arith.mulf %1, %39 : vector<256x64xf32>
    %41 = vector.broadcast %38 : vector<1x64xf32> to vector<256x64xf32>
    %42 = arith.addf %40, %41 : vector<256x64xf32>
    %cst_9 = arith.constant 0.000000e+00 : f32
    %43 = vector.broadcast %cst_9 : f32 to vector<256x64xf32>
    %44 = arith.subf %43, %42 : vector<256x64xf32>
    %45 = math.exp %44 : vector<256x64xf32>
    %cst_10 = arith.constant 1.000000e+00 : f32
    %46 = vector.broadcast %cst_10 : f32 to vector<256x64xf32>
    %47 = arith.addf %46, %45 : vector<256x64xf32>
    %cst_11 = arith.constant 1.000000e+00 : f32
    %48 = vector.broadcast %cst_11 : f32 to vector<256x64xf32>
    %49 = arith.divf %48, %47 : vector<256x64xf32>
    %50 = arith.mulf %1, %49 : vector<256x64xf32>
    %c0_12 = arith.constant 0 : index
    %c0_13 = arith.constant 0 : index
    %c0_14 = arith.constant 0 : index
    %51 = vector.load %arg3[%c0_12, %c0_13, %c0_14] : memref<1x256x64xf32, #tpu.memory_space<vmem>>, vector<1x256x64xf32>
    %52 = vector.shape_cast %51 : vector<1x256x64xf32> to vector<256x64xf32>
    %53 = vector.shape_cast %50 : vector<256x64xf32> to vector<1x256x64xf32>
    tpu.vector_store %arg3[%c0_12, %c0_13, %c0_14], %53 {strides = array<i32>} : memref<1x256x64xf32, #tpu.memory_space<vmem>>, vector<1x256x64xf32>,
    return
  }
  func.func @transform_0(%arg0: i32) -> (i32, i32, i32) {
    %c0_i32 = arith.constant 0 : i32
    %c0_i32_0 = arith.constant 0 : i32
    %c0_i32_1 = arith.constant 0 : i32
    return %arg0, %c0_i32, %c0_i32_0 : i32, i32, i32
  }
  func.func @transform_1(%arg0: i32) -> (i32, i32) {
    %c0_i32 = arith.constant 0 : i32
    %c0_i32_0 = arith.constant 0 : i32
    %c0_i32_1 = arith.constant 0 : i32
    return %c0_i32, %c0_i32_0 : i32, i32
  }
  func.func @transform_2(%arg0: i32) -> (i32, i32, i32) {
    %c0_i32 = arith.constant 0 : i32
    %c0_i32_0 = arith.constant 0 : i32
    %c0_i32_1 = arith.constant 0 : i32
    return %arg0, %c0_i32, %c0_i32_0 : i32, i32, i32
  }
}

</mosaic_0001>

<llo_original>
// kernel: shuffle_attention.1
$region0: #{shuffle_attention.1}
  #allocation0 [shape = 'u32[]', space=smem, size = 0x4, offset = 0x4, fixed_abs, tag = 'smem constant byte address 0x4 - core index']
  #allocation1 [shape = 'u32[144,128]{1,0:T(1,128)}', space=vmem, size = 0x12000, scoped, tag = 'internal scratch']
  %s0 = inlined_call_operand.vmem [shape: f32[2,256,64], index: 0, kind: input, shape index: {}]
  %s1 = inlined_call_operand.vmem [shape: f32[8,64], index: 1, kind: input, shape index: {}]
  %s2 = inlined_call_operand.hbm [shape: f32[2,256,64], index: 2, kind: output, shape index: {}]
  %s3 = sld [smem:[#allocation0]]
  $region41: #{shuffle_attention.1} parent=0
    _
  %s5 = ssub.s32 1, %s3
  %s6 = scalar_select 0, %s5, %s3
  $region1: #{shuffle_attention.1} parent=0
    #allocation2 [shape = 'u8[262144]{0}', space=vmem, size = 0x40000, scoped, tag = 'output window, operand 0']
    #allocation3 [shape = 's32[2]{0}', space=sflag, size = 0x8, scoped, tag = 'scoped memory for shuffle_attention.1']
    %7 = vsyncpa [#allocation3], 0
    %s8 = scalar_lea.sflag [#allocation3], 1
    %9 = vsyncpa %s8, 0
    loop: start=0, step=1, limit=4
    $region2: #{shuffle_attention.1} parent=1 // loop_pre_header
      _
    $region3: #{shuffle_attention.1} parent=1 // loop_header
      %s11 = sphi 0, %s15
      %p12 = scmp.ge.s32.totalorder %s11, 4
      %s21 = sphi 0, %s23
      %s24 = sphi 0, %s21
      %s25 = sphi 0, %s24
      %s41 = sphi 0, %s25
      %s45 = sphi 0, %s45
      %s47 = sphi 0, %s45
      %s48 = sphi 0, %s47
      %s62 = sphi 0, %s48
      %s68 = sphi 0, %s70
      %s71 = sphi 0, %s68
      %s72 = sphi 0, %s71
      %s88 = sphi 0, %s72
    $region4: #{shuffle_attention.1} parent=1 // loop_header_branch
      %14 = sbr.rel (%p12) target = $region8
    $region5: #{shuffle_attention.1} parent=1 // loop_body
      %s16 = ssub.s32 %s11, 1
      %s17 = ssub.s32 %s11, 2
      %s18 = sadd.s32 %s11, 1
      %s19 = ssub.s32 %s11, %s18
      %p20 = scmp.eq.s32.totalorder %s19, 0
      %s22 = sadd.s32 %s21, 1
      %s23 = scalar_select %p20, %s21, %s22
      %p26 = pneg %p20
      %p27 = scmp.eq.s32.totalorder %s11, 1
      %p28 = por %p26, %p27
      %p29 = scmp.ne.s32.totalorder %s21, %s24
      %p30 = scmp.eq.s32.totalorder %s11, 0
      %p31 = por %p29, %p30
      %p32 = scmp.ne.s32.totalorder %s21, %s24
      %p33 = scmp.eq.s32.totalorder %s16, 1
      %p34 = por %p32, %p33
      %p35 = scmp.ne.s32.totalorder %s24, %s25
      %p36 = scmp.eq.s32.totalorder %s16, 0
      %p37 = por %p35, %p36
      %p38 = scmp.ne.s32.totalorder %s24, %s25
      %p39 = scmp.eq.s32.totalorder %s17, 1
      %p40 = por %p38, %p39
      %p42 = scmp.ne.s32.totalorder %s25, %s41
      %p43 = scmp.eq.s32.totalorder %s17, 0
      %p44 = por %p42, %p43
      %s46 = sadd.s32 %s45, 1
      %p49 = scmp.eq.s32.totalorder %s11, 1
      %p50 = scmp.ne.s32.totalorder %s45, %s47
      %p51 = scmp.eq.s32.totalorder %s11, 0
      %p52 = por %p50, %p51
      %p53 = scmp.ne.s32.totalorder %s45, %s47
      %p54 = scmp.eq.s32.totalorder %s16, 1
      %p55 = por %p53, %p54
      %p56 = scmp.ne.s32.totalorder %s47, %s48
      %p57 = scmp.eq.s32.totalorder %s16, 0
      %p58 = por %p56, %p57
      %p59 = scmp.ne.s32.totalorder %s47, %s48
      %p60 = scmp.eq.s32.totalorder %s17, 1
      %p61 = por %p59, %p60
      %p63 = scmp.ne.s32.totalorder %s48, %s62
      %p64 = scmp.eq.s32.totalorder %s17, 0
      %p65 = por %p63, %p64
      %s66 = ssub.s32 %s11, %s18
      %p67 = scmp.eq.s32.totalorder %s66, 0
      %s69 = sadd.s32 %s68, 1
      %s70 = scalar_select %p67, %s68, %s69
      %p73 = pneg %p67
      %p74 = scmp.eq.s32.totalorder %s11, 1
      %p75 = por %p73, %p74
      %p76 = scmp.ne.s32.totalorder %s68, %s71
      %p77 = scmp.eq.s32.totalorder %s11, 0
      %p78 = por %p76, %p77
      %p79 = scmp.ne.s32.totalorder %s68, %s71
      %p80 = scmp.eq.s32.totalorder %s16, 1
      %p81 = por %p79, %p80
      %p82 = scmp.ne.s32.totalorder %s71, %s72
      %p83 = scmp.eq.s32.totalorder %s16, 0
      %p84 = por %p82, %p83
      %p85 = scmp.ne.s32.totalorder %s71, %s72
      %p86 = scmp.eq.s32.totalorder %s17, 1
      %p87 = por %p85, %p86
      %p89 = scmp.ne.s32.totalorder %s72, %s88
      %p90 = scmp.eq.s32.totalorder %s17, 0
      %p91 = por %p89, %p90
      %p92 = scmp.le.s32.totalorder 1, %s11
      %p93 = scmp.lt.s32.totalorder %s11, 3
      %p94 = pnand %p92, %p93
      %p95 = pneg %p94
      // Predicated region
      $region9: #{shuffle_attention.1} parent=5 // pred_check
        _
      $region10: #{shuffle_attention.1} parent=5 // pred_check_branch
        %97 = sbr.rel (%p94) target = $region12
      $region11: #{shuffle_attention.1} parent=5 // pred_region
        %s98 = ssub.s32 %s11, 1
        // Predicated region
        $region13: #{shuffle_attention.1} parent=11 // pred_check
          %p99 = pneg %p58
        $region14: #{shuffle_attention.1} parent=11 // pred_check_branch
          %101 = sbr.rel (%p99) target = $region16
        $region15: #{shuffle_attention.1} parent=11 // pred_region
          _
        $region16: #{shuffle_attention.1} parent=11 // pred_fallthru
          _
      $region12: #{shuffle_attention.1} parent=5 // pred_fallthru
        _
      %p102 = scmp.lt.s32.totalorder %s11, 2
      // Predicated region
      $region17: #{shuffle_attention.1} parent=5 // pred_check
        %p103 = pneg %p102
      $region18: #{shuffle_attention.1} parent=5 // pred_check_branch
        %105 = sbr.rel (%p103) target = $region20
      $region19: #{shuffle_attention.1} parent=5 // pred_region
        // Predicated region
        $region21: #{shuffle_attention.1} parent=19 // pred_check
          %p106 = pneg %p31
        $region22: #{shuffle_attention.1} parent=19 // pred_check_branch
          %108 = sbr.rel (%p106) target = $region24
        $region23: #{shuffle_attention.1} parent=19 // pred_region
          %p109 = scmp.lt.s32.totalorder %s11, 1
          %s110 = scalar_select %p109, %s11, 1
          %s111 = smul.addr %s110, 32
          %s112 = smul.addr %s111, 8
          %s113 = scalar_lea.vmem %s0, %s112
        $region24: #{shuffle_attention.1} parent=19 // pred_fallthru
          _
      $region20: #{shuffle_attention.1} parent=5 // pred_fallthru
        _
      %p114 = scmp.le.s32.totalorder 1, %s11
      %p115 = scmp.lt.s32.totalorder %s11, 3
      %p116 = pnand %p114, %p115
      %p117 = pneg %p116
      // Predicated region
      $region25: #{shuffle_attention.1} parent=5 // pred_check
        _
      $region26: #{shuffle_attention.1} parent=5 // pred_check_branch
        %119 = sbr.rel (%p116) target = $region28
      $region27: #{shuffle_attention.1} parent=5 // pred_region
        %s120 = ssub.s32 %s11, 1
        %p121 = scmp.lt.s32.totalorder %s16, 1
        %s122 = scalar_select %p121, %s16, 1
        %s123 = smul.addr %s122, 32
        %s124 = smul.addr %s123, 8
        %s125 = scalar_lea.vmem %s0, %s124
        %p126 = pneg %p37
        %p127 = pneg %p34
        %p128 = pneg %p58
        %p129 = pneg %p55
        %p130 = pneg %p84
        %p131 = pneg %p81
        %s132 = sand.u32 %s71, 1
        %s133 = scalar_lea.sflag [#allocation3], %s132
        %s134 = sand.u32 %s71, 1
        %s135 = smul.addr %s134, 256
        %s136 = scalar_lea.vmem [#allocation2], %s135
        %p137 = scmp.lt.s32.totalorder %s16, 1
        %s138 = scalar_select %p137, %s16, 1
        %s139 = smul.addr %s138, 32
        %s140 = smul.addr %s139, 8
        %s141 = scalar_lea.vmem %s0, %s140
        %v142 = vld [vmem:[%s141] sm:$0xff]
        %v143 = vld [vmem:[%s141 + $0x8] sm:$0xff]
        %v144 = vld [vmem:[%s141 + $0x10] sm:$0xff]
        %v145 = vld [vmem:[%s141 + $0x18] sm:$0xff]
        %v146 = vld [vmem:[%s141 + $0x20] sm:$0xff]
        %v147 = vld [vmem:[%s141 + $0x28] sm:$0xff]
        %v148 = vld [vmem:[%s141 + $0x30] sm:$0xff]
        %v149 = vld [vmem:[%s141 + $0x38] sm:$0xff]
        %v150 = vld [vmem:[%s141 + $0x40] sm:$0xff]
        %v151 = vld [vmem:[%s141 + $0x48] sm:$0xff]
        %v152 = vld [vmem:[%s141 + $0x50] sm:$0xff]
        %v153 = vld [vmem:[%s141 + $0x58] sm:$0xff]
        %v154 = vld [vmem:[%s141 + $0x60] sm:$0xff]
        %v155 = vld [vmem:[%s141 + $0x68] sm:$0xff]
        %v156 = vld [vmem:[%s141 + $0x70] sm:$0xff]
        %v157 = vld [vmem:[%s141 + $0x78] sm:$0xff]
        %v158 = vld [vmem:[%s141 + $0x80] sm:$0xff]
        %v159 = vld [vmem:[%s141 + $0x88] sm:$0xff]
        %v160 = vld [vmem:[%s141 + $0x90] sm:$0xff]
        %v161 = vld [vmem:[%s141 + $0x98] sm:$0xff]
        %v162 = vld [vmem:[%s141 + $0xa0] sm:$0xff]
        %v163 = vld [vmem:[%s141 + $0xa8] sm:$0xff]
        %v164 = vld [vmem:[%s141 + $0xb0] sm:$0xff]
        %v165 = vld [vmem:[%s141 + $0xb8] sm:$0xff]
        %v166 = vld [vmem:[%s141 + $0xc0] sm:$0xff]
        %v167 = vld [vmem:[%s141 + $0xc8] sm:$0xff]
        %v168 = vld [vmem:[%s141 + $0xd0] sm:$0xff]
        %v169 = vld [vmem:[%s141 + $0xd8] sm:$0xff]
        %v170 = vld [vmem:[%s141 + $0xe0] sm:$0xff]
        %v171 = vld [vmem:[%s141 + $0xe8] sm:$0xff]
        %v172 = vld [vmem:[%s141 + $0xf0] sm:$0xff]
        %v173 = vld [vmem:[%s141 + $0xf8] sm:$0xff]
        %v174 = vld [vmem:[%s1] sm:$0xff]
        %vm175 = vcmask 523264
        %v176 = vsel %vm175, %v142, 0.0
        %v177 = vsel %vm175, %v143, 0.0
        %v178 = vadd.f32 %v176, %v177
        %v179 = vsel %vm175, %v144, 0.0
        %v180 = vadd.f32 %v178, %v179
        %v181 = vsel %vm175, %v145, 0.0
        %v182 = vadd.f32 %v180, %v181
        %v183 = vsel %vm175, %v146, 0.0
        %v184 = vadd.f32 %v182, %v183
        %v185 = vsel %vm175, %v147, 0.0
        %v186 = vadd.f32 %v184, %v185
        %v187 = vsel %vm175, %v148, 0.0
        %v188 = vadd.f32 %v186, %v187
        %v189 = vsel %vm175, %v149, 0.0
        %v190 = vadd.f32 %v188, %v189
        %v191 = vsel %vm175, %v150, 0.0
        %v192 = vadd.f32 %v190, %v191
        %v193 = vsel %vm175, %v151, 0.0
        %v194 = vadd.f32 %v192, %v193
        %v195 = vsel %vm175, %v152, 0.0
        %v196 = vadd.f32 %v194, %v195
        %v197 = vsel %vm175, %v153, 0.0
        %v198 = vadd.f32 %v196, %v197
        %v199 = vsel %vm175, %v154, 0.0
        %v200 = vadd.f32 %v198, %v199
        %v201 = vsel %vm175, %v155, 0.0
        %v202 = vadd.f32 %v200, %v201
        %v203 = vsel %vm175, %v156, 0.0
        %v204 = vadd.f32 %v202, %v203
        %v205 = vsel %vm175, %v157, 0.0
        %v206 = vadd.f32 %v204, %v205
        %v207 = vsel %vm175, %v158, 0.0
        %v208 = vadd.f32 %v206, %v207
        %v209 = vsel %vm175, %v159, 0.0
        %v210 = vadd.f32 %v208, %v209
        %v211 = vsel %vm175, %v160, 0.0
        %v212 = vadd.f32 %v210, %v211
        %v213 = vsel %vm175, %v161, 0.0
        %v214 = vadd.f32 %v212, %v213
        %v215 = vsel %vm175, %v162, 0.0
        %v216 = vadd.f32 %v214, %v215
        %v217 = vsel %vm175, %v163, 0.0
        %v218 = vadd.f32 %v216, %v217
        %v219 = vsel %vm175, %v164, 0.0
        %v220 = vadd.f32 %v218, %v219
        %v221 = vsel %vm175, %v165, 0.0
        %v222 = vadd.f32 %v220, %v221
        %v223 = vsel %vm175, %v166, 0.0
        %v224 = vadd.f32 %v222, %v223
        %v225 = vsel %vm175, %v167, 0.0
        %v226 = vadd.f32 %v224, %v225
        %v227 = vsel %vm175, %v168, 0.0
        %v228 = vadd.f32 %v226, %v227
        %v229 = vsel %vm175, %v169, 0.0
        %v230 = vadd.f32 %v228, %v229
        %v231 = vsel %vm175, %v170, 0.0
        %v232 = vadd.f32 %v230, %v231
        %v233 = vsel %vm175, %v171, 0.0
        %v234 = vadd.f32 %v232, %v233
        %v235 = vsel %vm175, %v172, 0.0
        %v236 = vadd.f32 %v234, %v235
        %v237 = vsel %vm175, %v173, 0.0
        %v238 = vadd.f32 %v236, %v237
        %v239 = vrot.slane %v238, 4
        %v240 = vadd.f32 %v238, %v239
        %v241 = vrot.slane %v240, 2
        %v242 = vadd.f32 %v240, %v241
        %v243 = vrot.slane %v242, 1
        %v244 = vadd.f32 %v242, %v243
        %v245 = vmul.f32 %v244, 0.00390625
        %v246 = vsub.f32 %v142, %v245
        %v247 = vsub.f32 %v143, %v245
        %v248 = vsub.f32 %v144, %v245
        %v249 = vsub.f32 %v145, %v245
        %v250 = vsub.f32 %v146, %v245
        %v251 = vsub.f32 %v147, %v245
        %v252 = vsub.f32 %v148, %v245
        %v253 = vsub.f32 %v149, %v245
        %v254 = vsub.f32 %v150, %v245
        %v255 = vsub.f32 %v151, %v245
        %v256 = vsub.f32 %v152, %v245
        %v257 = vsub.f32 %v153, %v245
        %v258 = vsub.f32 %v154, %v245
        %v259 = vsub.f32 %v155, %v245
        %v260 = vsub.f32 %v156, %v245
        %v261 = vsub.f32 %v157, %v245
        %v262 = vsub.f32 %v158, %v245
        %v263 = vsub.f32 %v159, %v245
        %v264 = vsub.f32 %v160, %v245
        %v265 = vsub.f32 %v161, %v245
        %v266 = vsub.f32 %v162, %v245
        %v267 = vsub.f32 %v163, %v245
        %v268 = vsub.f32 %v164, %v245
        %v269 = vsub.f32 %v165, %v245
        %v270 = vsub.f32 %v166, %v245
        %v271 = vsub.f32 %v167, %v245
        %v272 = vsub.f32 %v168, %v245
        %v273 = vsub.f32 %v169, %v245
        %v274 = vsub.f32 %v170, %v245
        %v275 = vsub.f32 %v171, %v245
        %v276 = vsub.f32 %v172, %v245
        %v277 = vsub.f32 %v173, %v245
        %v278 = vmul.f32 %v246, %v246
        %v279 = vmul.f32 %v247, %v247
        %v280 = vmul.f32 %v248, %v248
        %v281 = vmul.f32 %v249, %v249
        %v282 = vmul.f32 %v250, %v250
        %v283 = vmul.f32 %v251, %v251
        %v284 = vmul.f32 %v252, %v252
        %v285 = vmul.f32 %v253, %v253
        %v286 = vmul.f32 %v254, %v254
        %v287 = vmul.f32 %v255, %v255
        %v288 = vmul.f32 %v256, %v256
        %v289 = vmul.f32 %v257, %v257
        %v290 = vmul.f32 %v258, %v258
        %v291 = vmul.f32 %v259, %v259
        %v292 = vmul.f32 %v260, %v260
        %v293 = vmul.f32 %v261, %v261
        %v294 = vmul.f32 %v262, %v262
        %v295 = vmul.f32 %v263, %v263
        %v296 = vmul.f32 %v264, %v264
        %v297 = vmul.f32 %v265, %v265
        %v298 = vmul.f32 %v266, %v266
        %v299 = vmul.f32 %v267, %v267
        %v300 = vmul.f32 %v268, %v268
        %v301 = vmul.f32 %v269, %v269
        %v302 = vmul.f32 %v270, %v270
        %v303 = vmul.f32 %v271, %v271
        %v304 = vmul.f32 %v272, %v272
        %v305 = vmul.f32 %v273, %v273
        %v306 = vmul.f32 %v274, %v274
        %v307 = vmul.f32 %v275, %v275
        %v308 = vmul.f32 %v276, %v276
        %v309 = vmul.f32 %v277, %v277
        %v310 = vsel %vm175, %v278, 0.0
        %v311 = vsel %vm175, %v279, 0.0
        %v312 = vadd.f32 %v310, %v311
        %v313 = vsel %vm175, %v280, 0.0
        %v314 = vadd.f32 %v312, %v313
        %v315 = vsel %vm175, %v281, 0.0
        %v316 = vadd.f32 %v314, %v315
        %v317 = vsel %vm175, %v282, 0.0
        %v318 = vadd.f32 %v316, %v317
        %v319 = vsel %vm175, %v283, 0.0
        %v320 = vadd.f32 %v318, %v319
        %v321 = vsel %vm175, %v284, 0.0
        %v322 = vadd.f32 %v320, %v321
        %v323 = vsel %vm175, %v285, 0.0
        %v324 = vadd.f32 %v322, %v323
        %v325 = vsel %vm175, %v286, 0.0
        %v326 = vadd.f32 %v324, %v325
        %v327 = vsel %vm175, %v287, 0.0
        %v328 = vadd.f32 %v326, %v327
        %v329 = vsel %vm175, %v288, 0.0
        %v330 = vadd.f32 %v328, %v329
        %v331 = vsel %vm175, %v289, 0.0
        %v332 = vadd.f32 %v330, %v331
        %v333 = vsel %vm175, %v290, 0.0
        %v334 = vadd.f32 %v332, %v333
        %v335 = vsel %vm175, %v291, 0.0
        %v336 = vadd.f32 %v334, %v335
        %v337 = vsel %vm175, %v292, 0.0
        %v338 = vadd.f32 %v336, %v337
        %v339 = vsel %vm175, %v293, 0.0
        %v340 = vadd.f32 %v338, %v339
        %v341 = vsel %vm175, %v294, 0.0
        %v342 = vadd.f32 %v340, %v341
        %v343 = vsel %vm175, %v295, 0.0
        %v344 = vadd.f32 %v342, %v343
        %v345 = vsel %vm175, %v296, 0.0
        %v346 = vadd.f32 %v344, %v345
        %v347 = vsel %vm175, %v297, 0.0
        %v348 = vadd.f32 %v346, %v347
        %v349 = vsel %vm175, %v298, 0.0
        %v350 = vadd.f32 %v348, %v349
        %v351 = vsel %vm175, %v299, 0.0
        %v352 = vadd.f32 %v350, %v351
        %v353 = vsel %vm175, %v300, 0.0
        %v354 = vadd.f32 %v352, %v353
        %v355 = vsel %vm175, %v301, 0.0
        %v356 = vadd.f32 %v354, %v355
        %v357 = vsel %vm175, %v302, 0.0
        %v358 = vadd.f32 %v356, %v357
        %v359 = vsel %vm175, %v303, 0.0
        %v360 = vadd.f32 %v358, %v359
        %v361 = vsel %vm175, %v304, 0.0
        %v362 = vadd.f32 %v360, %v361
        %v363 = vsel %vm175, %v305, 0.0
        %v364 = vadd.f32 %v362, %v363
        %v365 = vsel %vm175, %v306, 0.0
        %v366 = vadd.f32 %v364, %v365
        %v367 = vsel %vm175, %v307, 0.0
        %v368 = vadd.f32 %v366, %v367
        %v369 = vsel %vm175, %v308, 0.0
        %v370 = vadd.f32 %v368, %v369
        %v371 = vsel %vm175, %v309, 0.0
        %v372 = vadd.f32 %v370, %v371
        %v373 = vrot.slane %v372, 4
        %v374 = vadd.f32 %v372, %v373
        %v375 = vrot.slane %v374, 2
        %v376 = vadd.f32 %v374, %v375
        %v377 = vrot.slane %v376, 1
        %v378 = vadd.f32 %v376, %v377
        %v379 = vmul.f32 %v378, 0.00390625
        %v380 = vadd.f32 %v379, 1e-05
        %v381 = vrsqrt.pop %v380
        %v383 = vrot.slane %v174, 2
        %v385 = vmul.f32 %v174, %v383
        %v386 = vmul.f32 %v385, %v381
        %v388 = vrot.slane %v386, 3
        %v390 = vmul.f32 %v174, %v388
        %v391 = vmul.f32 %v174, %v381
        %v392 = vmul.f32 %v391, %v245
        %v394 = vrot.slane %v392, 7
        %v396 = vsub.f32 %v174, %v394
        %v398 = vrot.slane %v396, 3
        %v400 = vmul.f32 %v174, %v398
        %v402 = vrot.slane %v400, 7
        %v404 = vadd.f32 %v174, %v402
        %v406 = vrot.slane %v404, 4
        %v408 = vmul.f32 %v174, %v406
        %v409 = vsub.f32 1.0, %v174
        %v410 = vmul.f32 %v174, %v245
        %v411 = vrot.slane %v174, 1
        %v413 = vadd.f32 %v410, %v411
        %v415 = vrot.slane %v413, 1
        %v417 = vmul.f32 %v409, %v415
        %v418 = vadd.f32 %v408, %v417
        %v419 = vlaneseq
        %v420 = vshrl.u32 %v419, 7
        %v421 = vsub.s32 0, %v420
        %v422 = vrot.slane %v390, %v421
        %v423 = vmul.f32 %v142, %v422
        %v424 = vmul.f32 %v143, %v422
        %v425 = vmul.f32 %v144, %v422
        %v426 = vmul.f32 %v145, %v422
        %v427 = vmul.f32 %v146, %v422
        %v428 = vmul.f32 %v147, %v422
        %v429 = vmul.f32 %v148, %v422
        %v430 = vmul.f32 %v149, %v422
        %v431 = vmul.f32 %v150, %v422
        %v432 = vmul.f32 %v151, %v422
        %v433 = vmul.f32 %v152, %v422
        %v434 = vmul.f32 %v153, %v422
        %v435 = vmul.f32 %v154, %v422
        %v436 = vmul.f32 %v155, %v422
        %v437 = vmul.f32 %v156, %v422
        %v438 = vmul.f32 %v157, %v422
        %v439 = vmul.f32 %v158, %v422
        %v440 = vmul.f32 %v159, %v422
        %v441 = vmul.f32 %v160, %v422
        %v442 = vmul.f32 %v161, %v422
        %v443 = vmul.f32 %v162, %v422
        %v444 = vmul.f32 %v163, %v422
        %v445 = vmul.f32 %v164, %v422
        %v446 = vmul.f32 %v165, %v422
        %v447 = vmul.f32 %v166, %v422
        %v448 = vmul.f32 %v167, %v422
        %v449 = vmul.f32 %v168, %v422
        %v450 = vmul.f32 %v169, %v422
        %v451 = vmul.f32 %v170, %v422
        %v452 = vmul.f32 %v171, %v422
        %v453 = vmul.f32 %v172, %v422
        %v454 = vmul.f32 %v173, %v422
        %v455 = vlaneseq
        %v456 = vshrl.u32 %v455, 7
        %v457 = vsub.s32 0, %v456
        %v458 = vrot.slane %v418, %v457
        %v459 = vadd.f32 %v423, %v458
        %v460 = vadd.f32 %v424, %v458
        %v461 = vadd.f32 %v425, %v458
        %v462 = vadd.f32 %v426, %v458
        %v463 = vadd.f32 %v427, %v458
        %v464 = vadd.f32 %v428, %v458
        %v465 = vadd.f32 %v429, %v458
        %v466 = vadd.f32 %v430, %v458
        %v467 = vadd.f32 %v431, %v458
        %v468 = vadd.f32 %v432, %v458
        %v469 = vadd.f32 %v433, %v458
        %v470 = vadd.f32 %v434, %v458
        %v471 = vadd.f32 %v435, %v458
        %v472 = vadd.f32 %v436, %v458
        %v473 = vadd.f32 %v437, %v458
        %v474 = vadd.f32 %v438, %v458
        %v475 = vadd.f32 %v439, %v458
        %v476 = vadd.f32 %v440, %v458
        %v477 = vadd.f32 %v441, %v458
        %v478 = vadd.f32 %v442, %v458
        %v479 = vadd.f32 %v443, %v458
        %v480 = vadd.f32 %v444, %v458
        %v481 = vadd.f32 %v445, %v458
        %v482 = vadd.f32 %v446, %v458
        %v483 = vadd.f32 %v447, %v458
        %v484 = vadd.f32 %v448, %v458
        %v485 = vadd.f32 %v449, %v458
        %v486 = vadd.f32 %v450, %v458
        %v487 = vadd.f32 %v451, %v458
        %v488 = vadd.f32 %v452, %v458
        %v489 = vadd.f32 %v453, %v458
        %v490 = vadd.f32 %v454, %v458
        %v491 = vsub.f32 0.0, %v459
        %v492 = vsub.f32 0.0, %v460
        %v493 = vsub.f32 0.0, %v461
        %v494 = vsub.f32 0.0, %v462
        %v495 = vsub.f32 0.0, %v463
        %v496 = vsub.f32 0.0, %v464
        %v497 = vsub.f32 0.0, %v465
        %v498 = vsub.f32 0.0, %v466
        %v499 = vsub.f32 0.0, %v467
        %v500 = vsub.f32 0.0, %v468
        %v501 = vsub.f32 0.0, %v469
        %v502 = vsub.f32 0.0, %v470
        %v503 = vsub.f32 0.0, %v471
        %v504 = vsub.f32 0.0, %v472
        %v505 = vsub.f32 0.0, %v473
        %v506 = vsub.f32 0.0, %v474
        %v507 = vsub.f32 0.0, %v475
        %v508 = vsub.f32 0.0, %v476
        %v509 = vsub.f32 0.0, %v477
        %v510 = vsub.f32 0.0, %v478
        %v511 = vsub.f32 0.0, %v479
        %v512 = vsub.f32 0.0, %v480
        %v513 = vsub.f32 0.0, %v481
        %v514 = vsub.f32 0.0, %v482
        %v515 = vsub.f32 0.0, %v483
        %v516 = vsub.f32 0.0, %v484
        %v517 = vsub.f32 0.0, %v485
        %v518 = vsub.f32 0.0, %v486
        %v519 = vsub.f32 0.0, %v487
        %v520 = vsub.f32 0.0, %v488
        %v521 = vsub.f32 0.0, %v489
        %v522 = vsub.f32 0.0, %v490
        %v523 = vmul.f32 %v491, 1.442695
        %v524 = vpow.pop %v523
        %v525 = vmul.f32 %v492, 1.442695
        %v526 = vpow.pop %v525
        %v527 = vmul.f32 %v493, 1.442695
        %v528 = vpow.pop %v527
        %v529 = vmul.f32 %v494, 1.442695
        %v530 = vpow.pop %v529
        %v531 = vmul.f32 %v495, 1.442695
        %v532 = vpow.pop %v531
        %v533 = vmul.f32 %v496, 1.442695
        %v534 = vpow.pop %v533
        %v535 = vmul.f32 %v497, 1.442695
        %v536 = vpow.pop %v535
        %v537 = vmul.f32 %v498, 1.442695
        %v538 = vpow.pop %v537
        %v539 = vmul.f32 %v499, 1.442695
        %v540 = vpow.pop %v539
        %v541 = vmul.f32 %v500, 1.442695
        %v542 = vpow.pop %v541
        %v543 = vmul.f32 %v501, 1.442695
        %v544 = vpow.pop %v543
        %v545 = vmul.f32 %v502, 1.442695
        %v546 = vpow.pop %v545
        %v547 = vmul.f32 %v503, 1.442695
        %v548 = vpow.pop %v547
        %v549 = vmul.f32 %v504, 1.442695
        %v550 = vpow.pop %v549
        %v551 = vmul.f32 %v505, 1.442695
        %v552 = vpow.pop %v551
        %v553 = vmul.f32 %v506, 1.442695
        %v554 = vpow.pop %v553
        %v555 = vmul.f32 %v507, 1.442695
        %v556 = vpow.pop %v555
        %v557 = vmul.f32 %v508, 1.442695
        %v558 = vpow.pop %v557
        %v559 = vmul.f32 %v509, 1.442695
        %v560 = vpow.pop %v559
        %v561 = vmul.f32 %v510, 1.442695
        %v562 = vpow.pop %v561
        %v563 = vmul.f32 %v511, 1.442695
        %v564 = vpow.pop %v563
        %v565 = vmul.f32 %v512, 1.442695
        %v566 = vpow.pop %v565
        %v567 = vmul.f32 %v513, 1.442695
        %v568 = vpow.pop %v567
        %v569 = vmul.f32 %v514, 1.442695
        %v570 = vpow.pop %v569
        %v571 = vmul.f32 %v515, 1.442695
        %v572 = vpow.pop %v571
        %v573 = vmul.f32 %v516, 1.442695
        %v574 = vpow.pop %v573
        %v575 = vmul.f32 %v517, 1.442695
        %v576 = vpow.pop %v575
        %v577 = vmul.f32 %v518, 1.442695
        %v578 = vpow.pop %v577
        %v579 = vmul.f32 %v519, 1.442695
        %v580 = vpow.pop %v579
        %v581 = vmul.f32 %v520, 1.442695
        %v582 = vpow.pop %v581
        %v583 = vmul.f32 %v521, 1.442695
        %v584 = vpow.pop %v583
        %v585 = vmul.f32 %v522, 1.442695
        %v586 = vpow.pop %v585
        %v587 = vadd.f32 %v524, 1.0
        %v588 = vadd.f32 %v526, 1.0
        %v589 = vadd.f32 %v528, 1.0
        %v590 = vadd.f32 %v530, 1.0
        %v591 = vadd.f32 %v532, 1.0
        %v592 = vadd.f32 %v534, 1.0
        %v593 = vadd.f32 %v536, 1.0
        %v594 = vadd.f32 %v538, 1.0
        %v595 = vadd.f32 %v540, 1.0
        %v596 = vadd.f32 %v542, 1.0
        %v597 = vadd.f32 %v544, 1.0
        %v598 = vadd.f32 %v546, 1.0
        %v599 = vadd.f32 %v548, 1.0
        %v600 = vadd.f32 %v550, 1.0
        %v601 = vadd.f32 %v552, 1.0
        %v602 = vadd.f32 %v554, 1.0
        %v603 = vadd.f32 %v556, 1.0
        %v604 = vadd.f32 %v558, 1.0
        %v605 = vadd.f32 %v560, 1.0
        %v606 = vadd.f32 %v562, 1.0
        %v607 = vadd.f32 %v564, 1.0
        %v608 = vadd.f32 %v566, 1.0
        %v609 = vadd.f32 %v568, 1.0
        %v610 = vadd.f32 %v570, 1.0
        %v611 = vadd.f32 %v572, 1.0
        %v612 = vadd.f32 %v574, 1.0
        %v613 = vadd.f32 %v576, 1.0
        %v614 = vadd.f32 %v578, 1.0
        %v615 = vadd.f32 %v580, 1.0
        %v616 = vadd.f32 %v582, 1.0
        %v617 = vadd.f32 %v584, 1.0
        %v618 = vadd.f32 %v586, 1.0
        %v619 = vrcp.pop %v587
        %v620 = vmul.f32 1.0, %v619
        %v621 = vrcp.pop %v588
        %v622 = vmul.f32 1.0, %v621
        %v623 = vrcp.pop %v589
        %v624 = vmul.f32 1.0, %v623
        %v625 = vrcp.pop %v590
        %v626 = vmul.f32 1.0, %v625
        %v627 = vrcp.pop %v591
        %v628 = vmul.f32 1.0, %v627
        %v629 = vrcp.pop %v592
        %v630 = vmul.f32 1.0, %v629
        %v631 = vrcp.pop %v593
        %v632 = vmul.f32 1.0, %v631
        %v633 = vrcp.pop %v594
        %v634 = vmul.f32 1.0, %v633
        %v635 = vrcp.pop %v595
        %v636 = vmul.f32 1.0, %v635
        %v637 = vrcp.pop %v596
        %v638 = vmul.f32 1.0, %v637
        %v639 = vrcp.pop %v597
        %v640 = vmul.f32 1.0, %v639
        %v641 = vrcp.pop %v598
        %v642 = vmul.f32 1.0, %v641
        %v643 = vrcp.pop %v599
        %v644 = vmul.f32 1.0, %v643
        %v645 = vrcp.pop %v600
        %v646 = vmul.f32 1.0, %v645
        %v647 = vrcp.pop %v601
        %v648 = vmul.f32 1.0, %v647
        %v649 = vrcp.pop %v602
        %v650 = vmul.f32 1.0, %v649
        %v651 = vrcp.pop %v603
        %v652 = vmul.f32 1.0, %v651
        %v653 = vrcp.pop %v604
        %v654 = vmul.f32 1.0, %v653
        %v655 = vrcp.pop %v605
        %v656 = vmul.f32 1.0, %v655
        %v657 = vrcp.pop %v606
        %v658 = vmul.f32 1.0, %v657
        %v659 = vrcp.pop %v607
        %v660 = vmul.f32 1.0, %v659
        %v661 = vrcp.pop %v608
        %v662 = vmul.f32 1.0, %v661
        %v663 = vrcp.pop %v609
        %v664 = vmul.f32 1.0, %v663
        %v665 = vrcp.pop %v610
        %v666 = vmul.f32 1.0, %v665
        %v667 = vrcp.pop %v611
        %v668 = vmul.f32 1.0, %v667
        %v669 = vrcp.pop %v612
        %v670 = vmul.f32 1.0, %v669
        %v671 = vrcp.pop %v613
        %v672 = vmul.f32 1.0, %v671
        %v673 = vrcp.pop %v614
        %v674 = vmul.f32 1.0, %v673
        %v675 = vrcp.pop %v615
        %v676 = vmul.f32 1.0, %v675
        %v677 = vrcp.pop %v616
        %v678 = vmul.f32 1.0, %v677
        %v679 = vrcp.pop %v617
        %v680 = vmul.f32 1.0, %v679
        %v681 = vrcp.pop %v618
        %v682 = vmul.f32 1.0, %v681
        %v683 = vmul.f32 %v142, %v620
        %v684 = vmul.f32 %v143, %v622
        %v685 = vmul.f32 %v144, %v624
        %v686 = vmul.f32 %v145, %v626
        %v687 = vmul.f32 %v146, %v628
        %v688 = vmul.f32 %v147, %v630
        %v689 = vmul.f32 %v148, %v632
        %v690 = vmul.f32 %v149, %v634
        %v691 = vmul.f32 %v150, %v636
        %v692 = vmul.f32 %v151, %v638
        %v693 = vmul.f32 %v152, %v640
        %v694 = vmul.f32 %v153, %v642
        %v695 = vmul.f32 %v154, %v644
        %v696 = vmul.f32 %v155, %v646
        %v697 = vmul.f32 %v156, %v648
        %v698 = vmul.f32 %v157, %v650
        %v699 = vmul.f32 %v158, %v652
        %v700 = vmul.f32 %v159, %v654
        %v701 = vmul.f32 %v160, %v656
        %v702 = vmul.f32 %v161, %v658
        %v703 = vmul.f32 %v162, %v660
        %v704 = vmul.f32 %v163, %v662
        %v705 = vmul.f32 %v164, %v664
        %v706 = vmul.f32 %v165, %v666
        %v707 = vmul.f32 %v166, %v668
        %v708 = vmul.f32 %v167, %v670
        %v709 = vmul.f32 %v168, %v672
        %v710 = vmul.f32 %v169, %v674
        %v711 = vmul.f32 %v170, %v676
        %v712 = vmul.f32 %v171, %v678
        %v713 = vmul.f32 %v172, %v680
        %v714 = vmul.f32 %v173, %v682
        %715 = vst.msk [vmem:[%s136] sm:$0xff] %vm175, %v683
        %716 = vst.msk [vmem:[%s136 + $0x8] sm:$0xff] %vm175, %v684
        %717 = vst.msk [vmem:[%s136 + $0x10] sm:$0xff] %vm175, %v685
        %718 = vst.msk [vmem:[%s136 + $0x18] sm:$0xff] %vm175, %v686
        %719 = vst.msk [vmem:[%s136 + $0x20] sm:$0xff] %vm175, %v687
        %720 = vst.msk [vmem:[%s136 + $0x28] sm:$0xff] %vm175, %v688
        %721 = vst.msk [vmem:[%s136 + $0x30] sm:$0xff] %vm175, %v689
        %722 = vst.msk [vmem:[%s136 + $0x38] sm:$0xff] %vm175, %v690
        %723 = vst.msk [vmem:[%s136 + $0x40] sm:$0xff] %vm175, %v691
        %724 = vst.msk [vmem:[%s136 + $0x48] sm:$0xff] %vm175, %v692
        %725 = vst.msk [vmem:[%s136 + $0x50] sm:$0xff] %vm175, %v693
        %726 = vst.msk [vmem:[%s136 + $0x58] sm:$0xff] %vm175, %v694
        %727 = vst.msk [vmem:[%s136 + $0x60] sm:$0xff] %vm175, %v695
        %728 = vst.msk [vmem:[%s136 + $0x68] sm:$0xff] %vm175, %v696
        %729 = vst.msk [vmem:[%s136 + $0x70] sm:$0xff] %vm175, %v697
        %730 = vst.msk [vmem:[%s136 + $0x78] sm:$0xff] %vm175, %v698
        %731 = vst.msk [vmem:[%s136 + $0x80] sm:$0xff] %vm175, %v699
        %732 = vst.msk [vmem:[%s136 + $0x88] sm:$0xff] %vm175, %v700
        %733 = vst.msk [vmem:[%s136 + $0x90] sm:$0xff] %vm175, %v701
        %734 = vst.msk [vmem:[%s136 + $0x98] sm:$0xff] %vm175, %v702
        %735 = vst.msk [vmem:[%s136 + $0xa0] sm:$0xff] %vm175, %v703
        %736 = vst.msk [vmem:[%s136 + $0xa8] sm:$0xff] %vm175, %v704
        %737 = vst.msk [vmem:[%s136 + $0xb0] sm:$0xff] %vm175, %v705
        %738 = vst.msk [vmem:[%s136 + $0xb8] sm:$0xff] %vm175, %v706
        %739 = vst.msk [vmem:[%s136 + $0xc0] sm:$0xff] %vm175, %v707
        %740 = vst.msk [vmem:[%s136 + $0xc8] sm:$0xff] %vm175, %v708
        %741 = vst.msk [vmem:[%s136 + $0xd0] sm:$0xff] %vm175, %v709
        %742 = vst.msk [vmem:[%s136 + $0xd8] sm:$0xff] %vm175, %v710
        %743 = vst.msk [vmem:[%s136 + $0xe0] sm:$0xff] %vm175, %v711
        %744 = vst.msk [vmem:[%s136 + $0xe8] sm:$0xff] %vm175, %v712
        %745 = vst.msk [vmem:[%s136 + $0xf0] sm:$0xff] %vm175, %v713
        %746 = vst.msk [vmem:[%s136 + $0xf8] sm:$0xff] %vm175, %v714
        %s747 = sand.u32 %s71, 1
        %s748 = scalar_lea.sflag [#allocation3], %s747
        %s749 = sand.u32 %s71, 1
        %s750 = smul.addr %s749, 256
        %s751 = scalar_lea.vmem [#allocation2], %s750
        // Predicated region
        $region29: #{shuffle_attention.1} parent=27 // pred_check
          %p752 = pneg %p81
        $region30: #{shuffle_attention.1} parent=27 // pred_check_branch
          %754 = sbr.rel (%p752) target = $region32
        $region31: #{shuffle_attention.1} parent=27 // pred_region
          %s756 = ssub.s32 4096, 4096
          %757 = vsyncadd %s748, %s756
          %s758 = smul.addr %s16, 32
          %s759 = smul.addr %s758, 128
          %s760 = scalar_lea.hbm %s2, %s759
          %s761 = sshll.u32 %s751, 4
          %s762 = int_to_ptr.vmem [resolvable:$true] %s761
          %767 = dma.vmem_to_hbm [thread:$0]  %s762, 4096, %s760, %s748, 128, 128, 8
        $region32: #{shuffle_attention.1} parent=27 // pred_fallthru
          _
      $region28: #{shuffle_attention.1} parent=5 // pred_fallthru
        _
      %p768 = scmp.le.s32.totalorder 2, %s11
      // Predicated region
      $region33: #{shuffle_attention.1} parent=5 // pred_check
        %p769 = pneg %p768
      $region34: #{shuffle_attention.1} parent=5 // pred_check_branch
        %771 = sbr.rel (%p769) target = $region36
      $region35: #{shuffle_attention.1} parent=5 // pred_region
        %s772 = ssub.s32 %s11, 2
        // Predicated region
        $region37: #{shuffle_attention.1} parent=35 // pred_check
          %p773 = pneg %p87
        $region38: #{shuffle_attention.1} parent=35 // pred_check_branch
          %775 = sbr.rel (%p773) target = $region40
        $region39: #{shuffle_attention.1} parent=35 // pred_region
          %s776 = sand.u32 %s72, 1
          %s777 = scalar_lea.sflag [#allocation3], %s776
          %s778 = sand.u32 %s72, 1
          %s779 = smul.addr %s778, 256
          %s780 = scalar_lea.vmem [#allocation2], %s779
          %781 = dma.done %s777, 4096
        $region40: #{shuffle_attention.1} parent=35 // pred_fallthru
          _
      $region36: #{shuffle_attention.1} parent=5 // pred_fallthru
        _
    $region6: #{shuffle_attention.1} parent=1 // loop_footer
      %s15 = sadd.s32 1, %s11
    $region7: #{shuffle_attention.1} parent=1 // loop_footer_branch
      %10 = sbr.rel target = $region3
    $region8: #{shuffle_attention.1} parent=1 // loop_exit
      _
    %782 = vsyncpa [#allocation3], 1
    %s783 = scalar_lea.sflag [#allocation3], 1
    %784 = vsyncpa %s783, 1

</llo_original>
